<compile_context>
chip_gen: v6e
topology: v6e:2x2x1
jax: 0.10.0
libtpu: 0.0.40
codegen_flags: <defaults>
</compile_context>

<pallas_src>
import jax
import jax.numpy as jnp
from jax.experimental import pallas as pl
from jax.experimental.pallas import tpu as pltpu

_SUBLANE = 8      # batch tile must be a multiple of the f32 sublane width
_MAX_TM = 2048    # rows per grid step (x+out tiles ~5-6 MiB VMEM at this size)


def _round_up(x, m):
    return (x + m - 1) // m * m


def _policy_net_kernel(x_ref, w1_ref, b1_ref, w2_ref, b2_ref, o_ref):
    # fc1: [TM, I](f32 -> bf16 in-kernel) @ [I, H](bf16) -> f32 accum.
    x = x_ref[...].astype(jnp.bfloat16)
    h = jnp.dot(x, w1_ref[...], preferred_element_type=jnp.float32)
    h = jnp.maximum(h + b1_ref[...], 0.0)
    # fc2: cast activations back to bf16 for the MXU, accumulate in f32.
    out = jnp.dot(h.astype(jnp.bfloat16), w2_ref[...],
                  preferred_element_type=jnp.float32)
    o_ref[...] = (out + b2_ref[...]).astype(o_ref.dtype)


def init_policy_net_params(key, num_inputs, num_outputs, hidden_size,
                           dtype=jnp.float32):
    """Deterministic init mirroring nn.Linear's default U(-1/sqrt(fan_in), +).

    Weights are stored pre-transposed as [in_features, out_features].
    """
    k1, k2, k3, k4 = jax.random.split(key, 4)
    bound1 = 1.0 / (num_inputs ** 0.5)
    bound2 = 1.0 / (hidden_size ** 0.5)
    w1 = jax.random.uniform(k1, (num_inputs, hidden_size), dtype,
                            minval=-bound1, maxval=bound1)
    b1 = jax.random.uniform(k2, (1, hidden_size), dtype,
                            minval=-bound1, maxval=bound1)
    w2 = jax.random.uniform(k3, (hidden_size, num_outputs), dtype,
                            minval=-bound2, maxval=bound2)
    b2 = jax.random.uniform(k4, (1, num_outputs), dtype,
                            minval=-bound2, maxval=bound2)
    return w1, b1, w2, b2


def prepare_policy_net_params(w1, b1, w2, b2):
    """One-time prep: cast weights to bf16 for the MXU (biases stay f32).
    No lane padding -- the kernel uses full-array blocks for the weights."""
    I, H = w1.shape
    H2, O = w2.shape
    assert H == H2
    return dict(
        w1=w1.astype(jnp.bfloat16),
        b1=b1.reshape(1, H).astype(jnp.float32),
        w2=w2.astype(jnp.bfloat16),
        b2=b2.reshape(1, O).astype(jnp.float32),
        num_inputs=I, num_outputs=O, hidden=H,
    )


def _pick_batch_tile(B):
    """Pick (TM, B_p) so that: TM % 8 == 0, grid >= 2 steps when B > 8
    (v7x dual-TC), TM <= _MAX_TM, and the zero-padded tail is minimal."""
    rows = _round_up(B, _SUBLANE)
    num_steps = max(1, pl.cdiv(rows, _MAX_TM))
    if rows > _SUBLANE:
        num_steps = max(num_steps, 2)
    TM = _round_up(pl.cdiv(rows, num_steps), _SUBLANE)
    B_p = _round_up(B, TM)
    return TM, B_p


def policy_net_forward(x, params):
    """x: [B, num_inputs] f32 -> [B, num_outputs] f32."""
    w1, b1, w2, b2 = params["w1"], params["b1"], params["w2"], params["b2"]
    B, I = x.shape
    assert I == params["num_inputs"]
    H = params["hidden"]
    O = params["num_outputs"]

    TM, B_p = _pick_batch_tile(B)
    # Only the batch dim is (maybe) padded; zero rows are sliced off at the end.
    x_p = x if B_p == B else jnp.pad(x, ((0, B_p - B), (0, 0)))

    grid = (B_p // TM,)
    flops = 2 * B_p * (I * H + H * O)
    bytes_accessed = (x_p.size * x_p.dtype.itemsize
                      + w1.size * w1.dtype.itemsize
                      + b1.size * b1.dtype.itemsize
                      + w2.size * w2.dtype.itemsize
                      + b2.size * b2.dtype.itemsize
                      + B_p * O * 4)

    out_p = pl.pallas_call(
        _policy_net_kernel,
        out_shape=jax.ShapeDtypeStruct((B_p, O), jnp.float32),
        grid=grid,
        in_specs=[
            # x tile: full (unpadded) feature dim, pipelined over the batch.
            pl.BlockSpec((TM, I), lambda i: (i, 0)),
            # Weights/biases: full-array blocks, constant index map -> resident.
            pl.BlockSpec((I, H), lambda i: (0, 0)),
            pl.BlockSpec((1, H), lambda i: (0, 0)),
            pl.BlockSpec((H, O), lambda i: (0, 0)),
            pl.BlockSpec((1, O), lambda i: (0, 0)),
        ],
        # Narrow output: block last dim == full array last dim (legal, and only
        # O real f32 columns ever hit HBM).
        out_specs=pl.BlockSpec((TM, O), lambda i: (i, 0)),
        compiler_params=pltpu.CompilerParams(
            dimension_semantics=("parallel",)),
        cost_estimate=pl.CostEstimate(flops=flops, transcendentals=0,
                                      bytes_accessed=bytes_accessed),
    )(x_p, w1, b1, w2, b2)

    return out_p if B_p == B else out_p[:B]


if __name__ == "__main__":
    num_inputs, num_outputs, hidden_size = 16, 4, 32
    batch = 8

    key = jax.random.PRNGKey(0)
    k_x, k_p = jax.random.split(key)
    x = jax.random.normal(k_x, (batch, num_inputs), jnp.float32)
    w1, b1, w2, b2 = init_policy_net_params(k_p, num_inputs, num_outputs,
                                            hidden_size)
    params = prepare_policy_net_params(w1, b1, w2, b2)

    out = policy_net_forward(x, params)
    jax.block_until_ready(out)

    # Pure-JAX f32 reference of the original forward pass; tolerance accounts
    # for bf16 MXU inputs (accumulation is f32).
    ref = jnp.maximum(x @ w1 + b1, 0.0) @ w2 + b2
    assert out.shape == (batch, num_outputs)
    assert jnp.allclose(out, ref, atol=5e-2, rtol=5e-2), (
        f"max abs err {jnp.max(jnp.abs(out - ref))}")

    print("KERNEL_OK")
</pallas_src>

<mosaic_0001>
module attributes {stable_mosaic.version = 11 : i64} {
  func.func @_policy_net_kernel(%arg0: i32, %arg1: memref<8x16xf32, #tpu.memory_space<vmem>>, %arg2: memref<16x32xbf16, #tpu.memory_space<vmem>>, %arg3: memref<1x32xf32, #tpu.memory_space<vmem>>, %arg4: memref<32x4xbf16, #tpu.memory_space<vmem>>, %arg5: memref<1x4xf32, #tpu.memory_space<vmem>>, %arg6: memref<8x4xf32, #tpu.memory_space<vmem>>) attributes {dimension_semantics = [#tpu.dimension_semantics<parallel>], iteration_bounds = array<i64: 1>, scalar_prefetch = 0 : i64, scratch_operands = 0 : i64, tpu.core_type = #tpu.core_type<tc>, window_params = [{transform_indices = @transform_0, window_bounds = array<i64: 8, 16>}, {pipeline_mode = #tpu.pipeline_mode<synchronous>, transform_indices = @transform_1, window_bounds = array<i64: 16, 32>}, {pipeline_mode = #tpu.pipeline_mode<synchronous>, transform_indices = @transform_2, window_bounds = array<i64: 1, 32>}, {pipeline_mode = #tpu.pipeline_mode<synchronous>, transform_indices = @transform_3, window_bounds = array<i64: 32, 4>}, {pipeline_mode = #tpu.pipeline_mode<synchronous>, transform_indices = @transform_4, window_bounds = array<i64: 1, 4>}, {transform_indices = @transform_5, window_bounds = array<i64: 8, 4>}]} {
    %c0 = arith.constant 0 : index
    %c0_0 = arith.constant 0 : index
    %0 = vector.load %arg1[%c0, %c0_0] : memref<8x16xf32, #tpu.memory_space<vmem>>, vector<8x16xf32>
    %1 = arith.truncf %0 : vector<8x16xf32> to vector<8x16xbf16>
    %c0_1 = arith.constant 0 : index
    %c0_2 = arith.constant 0 : index
    %2 = vector.load %arg2[%c0_1, %c0_2] : memref<16x32xbf16, #tpu.memory_space<vmem>>, vector<16x32xbf16>
    %cst = arith.constant dense<0.000000e+00> : vector<8x32xf32>
    %3 = tpu.matmul %1, %2, %cst {dimension_numbers = #tpu.dot_dimension_numbers<[1], [0], [0], [1], [0, 0, 1, 1], [], []>} : vector<8x16xbf16>, vector<16x32xbf16>, vector<8x32xf32> -> vector<8x32xf32>
    %c0_3 = arith.constant 0 : index
    %c0_4 = arith.constant 0 : index
    %4 = vector.load %arg3[%c0_3, %c0_4] : memref<1x32xf32, #tpu.memory_space<vmem>>, vector<1x32xf32>
    %5 = vector.broadcast %4 : vector<1x32xf32> to vector<8x32xf32>
    %6 = arith.addf %3, %5 : vector<8x32xf32>
    %cst_5 = arith.constant 0.000000e+00 : f32
    %7 = vector.broadcast %cst_5 : f32 to vector<8x32xf32>
    %8 = arith.maximumf %6, %7 : vector<8x32xf32>
    %9 = arith.truncf %8 : vector<8x32xf32> to vector<8x32xbf16>
    %c0_6 = arith.constant 0 : index
    %c0_7 = arith.constant 0 : index
    %10 = vector.load %arg4[%c0_6, %c0_7] : memref<32x4xbf16, #tpu.memory_space<vmem>>, vector<32x4xbf16>
    %cst_8 = arith.constant dense<0.000000e+00> : vector<8x4xf32>
    %11 = tpu.matmul %9, %10, %cst_8 {dimension_numbers = #tpu.dot_dimension_numbers<[1], [0], [0], [1], [0, 0, 1, 1], [], []>} : vector<8x32xbf16>, vector<32x4xbf16>, vector<8x4xf32> -> vector<8x4xf32>
    %c0_9 = arith.constant 0 : index
    %c0_10 = arith.constant 0 : index
    %12 = vector.load %arg5[%c0_9, %c0_10] : memref<1x4xf32, #tpu.memory_space<vmem>>, vector<1x4xf32>
    %13 = vector.broadcast %12 : vector<1x4xf32> to vector<8x4xf32>
    %14 = arith.addf %11, %13 : vector<8x4xf32>
    %c0_11 = arith.constant 0 : index
    %c0_12 = arith.constant 0 : index
    %15 = vector.load %arg6[%c0_11, %c0_12] : memref<8x4xf32, #tpu.memory_space<vmem>>, vector<8x4xf32>
    tpu.vector_store %arg6[%c0_11, %c0_12], %14 {strides = array<i32>} : memref<8x4xf32, #tpu.memory_space<vmem>>, vector<8x4xf32>,
    return
  }
  func.func @transform_0(%arg0: i32) -> (i32, i32) {
    %c0_i32 = arith.constant 0 : i32
    %c0_i32_0 = arith.constant 0 : i32
    return %arg0, %c0_i32 : i32, i32
  }
  func.func @transform_1(%arg0: i32) -> (i32, i32) {
    %c0_i32 = arith.constant 0 : i32
    %c0_i32_0 = arith.constant 0 : i32
    %c0_i32_1 = arith.constant 0 : i32
    return %c0_i32, %c0_i32_0 : i32, i32
  }
  func.func @transform_2(%arg0: i32) -> (i32, i32) {
    %c0_i32 = arith.constant 0 : i32
    %c0_i32_0 = arith.constant 0 : i32
    %c0_i32_1 = arith.constant 0 : i32
    return %c0_i32, %c0_i32_0 : i32, i32
  }
  func.func @transform_3(%arg0: i32) -> (i32, i32) {
    %c0_i32 = arith.constant 0 : i32
    %c0_i32_0 = arith.constant 0 : i32
    %c0_i32_1 = arith.constant 0 : i32
    return %c0_i32, %c0_i32_0 : i32, i32
  }
  func.func @transform_4(%arg0: i32) -> (i32, i32) {
    %c0_i32 = arith.constant 0 : i32
    %c0_i32_0 = arith.constant 0 : i32
    %c0_i32_1 = arith.constant 0 : i32
    return %c0_i32, %c0_i32_0 : i32, i32
  }
  func.func @transform_5(%arg0: i32) -> (i32, i32) {
    %c0_i32 = arith.constant 0 : i32
    %c0_i32_0 = arith.constant 0 : i32
    return %arg0, %c0_i32 : i32, i32
  }
}

</mosaic_0001>

<llo_original>
// kernel: tpu_custom_call.1
$region0: #{tpu_custom_call.1}
  #allocation0 [shape = 'u32[]', space=smem, size = 0x4, offset = 0x4, fixed_abs, tag = 'smem constant byte address 0x4 - core index']
  #allocation1 [shape = 'u32[144,128]{1,0:T(1,128)}', space=vmem, size = 0x12000, scoped, tag = 'internal scratch']
  %s0 = inlined_call_operand.vmem [shape: f32[8,16], index: 0, kind: input, shape index: {}]
  %s1 = inlined_call_operand.vmem [shape: bf16[16,32], index: 1, kind: input, shape index: {}]
  %s2 = inlined_call_operand.vmem [shape: f32[1,32], index: 2, kind: input, shape index: {}]
  %s3 = inlined_call_operand.vmem [shape: bf16[32,4], index: 3, kind: input, shape index: {}]
  %s4 = inlined_call_operand.vmem [shape: f32[1,4], index: 4, kind: input, shape index: {}]
  %s5 = inlined_call_operand.vmem [shape: f32[8,4], index: 5, kind: output, shape index: {}]
  %s6 = sld [smem:[#allocation0]]
  $region30: #{tpu_custom_call.1} parent=0
    _
  %s8 = ssub.s32 1, %s6
  %s9 = scalar_select 0, %s8, %s6
  // Predicated region
  $region2: #{tpu_custom_call.1} parent=0 // pred_check
    _
  $region3: #{tpu_custom_call.1} parent=0 // pred_check_branch
    %11 = sbr.rel (0) target = $region5
  $region4: #{tpu_custom_call.1} parent=0 // pred_region
    _
  $region5: #{tpu_custom_call.1} parent=0 // pred_fallthru
    _
  // Predicated region
  $region6: #{tpu_custom_call.1} parent=0 // pred_check
    _
  $region7: #{tpu_custom_call.1} parent=0 // pred_check_branch
    %13 = sbr.rel (0) target = $region9
  $region8: #{tpu_custom_call.1} parent=0 // pred_region
    _
  $region9: #{tpu_custom_call.1} parent=0 // pred_fallthru
    _
  // Predicated region
  $region10: #{tpu_custom_call.1} parent=0 // pred_check
    _
  $region11: #{tpu_custom_call.1} parent=0 // pred_check_branch
    %15 = sbr.rel (0) target = $region13
  $region12: #{tpu_custom_call.1} parent=0 // pred_region
    _
  $region13: #{tpu_custom_call.1} parent=0 // pred_fallthru
    _
  // Predicated region
  $region14: #{tpu_custom_call.1} parent=0 // pred_check
    _
  $region15: #{tpu_custom_call.1} parent=0 // pred_check_branch
    %17 = sbr.rel (0) target = $region17
  $region16: #{tpu_custom_call.1} parent=0 // pred_region
    _
  $region17: #{tpu_custom_call.1} parent=0 // pred_fallthru
    _
  // Predicated region
  $region18: #{tpu_custom_call.1} parent=0 // pred_check
    _
  $region19: #{tpu_custom_call.1} parent=0 // pred_check_branch
    %19 = sbr.rel (0) target = $region21
  $region20: #{tpu_custom_call.1} parent=0 // pred_region
    _
  $region21: #{tpu_custom_call.1} parent=0 // pred_fallthru
    _
  %v21 = vld [vmem:[%s0] sm:$0xff]
  %v22 = vpack.c.bf16 %v21, %v21
  %v23 = vld [vmem:[%s1] sm:$0xf]
  %v24 = vld [vmem:[%s1 + $0x4] sm:$0xf]
  %v25 = vld [vmem:[%s2] sm:$0x1]
  %v27 = vlaneseq
  %v28 = vshrl.u32 %v27, 7
  %v29 = vsub.s32 0, %v28
  %v30 = vrot.slane %v25, %v29
  %v34 = vunpack.c.l.b16 %v23
  %v35 = vunpack.c.l.b16 %v24
  %v36 = vpack.c.b16 %v35, %v34
  %vm38 = vcmask 130048
  %v40 = vsel %vm38, %v22, 0
  %42 = vmatprep.subr.bf16.mxu0 0
  %43 = vmatpush1.bf16.msra.mxu0 0
  %44 = vmatprep.subr.bf16.mxu0 0
  %45 = vmatpush1.bf16.msra.mxu0 0
  %46 = vmatprep.subr.bf16.mxu0 0
  %47 = vmatpush1.bf16.msra.mxu0 0
  %48 = vmatprep.subr.bf16.mxu0 0
  %49 = vmatpush1.bf16.msra.mxu0 0
  %50 = vmatprep.subr.bf16.mxu0 0
  %51 = vmatpush1.bf16.msra.mxu0 0
  %52 = vmatprep.subr.bf16.mxu0 0
  %53 = vmatpush1.bf16.msra.mxu0 0
  %54 = vmatprep.subr.bf16.mxu0 0
  %55 = vmatpush1.bf16.msra.mxu0 0
  %56 = vmatprep.subr.bf16.mxu0 0
  %57 = vmatpush1.bf16.msra.mxu0 %v36
  %58 = vmatprep.subr.bf16.mxu0 0
  %59 = vmatpush2.bf16.msra.mxu0 0
  %60 = vmatprep.subr.bf16.mxu0 0
  %61 = vmatpush2.bf16.msra.mxu0 0
  %62 = vmatprep.subr.bf16.mxu0 0
  %63 = vmatpush2.bf16.msra.mxu0 0
  %64 = vmatprep.subr.bf16.mxu0 0
  %65 = vmatpush2.bf16.msra.mxu0 0
  %66 = vmatprep.subr.bf16.mxu0 0
  %67 = vmatpush2.bf16.msra.mxu0 0
  %68 = vmatprep.subr.bf16.mxu0 0
  %69 = vmatpush2.bf16.msra.mxu0 0
  %70 = vmatprep.subr.bf16.mxu0 0
  %71 = vmatpush2.bf16.msra.mxu0 0
  %72 = vmatprep.subr.bf16.mxu0 0
  %73 = vmatpush2.bf16.msra.mxu0 0
  %74 = vmatprep.mubr.bf16.mxu0 0
  %75 = vmatmul.mubr.bf16.gmra.mxu0 %v40
  %v76 = vpop.f32.mrf.mxu0
  %v77 = vadd.f32 %v30, %v76
  %v78 = vpop.f32.mrf.mxu0
  %v79 = vpop.f32.mrf.mxu0
  %v80 = vpop.f32.mrf.mxu0
  %81 = vdwg.mxu0
  %v82 = vmax.f32 %v77, 0.0
  %v83 = vpack.c.bf16 %v82, %v82
  %v84 = vld [vmem:[%s3] sm:$0xf]
  %v85 = vld [vmem:[%s3 + $0x4] sm:$0xf]
  %v86 = vld [vmem:[%s3 + $0x8] sm:$0xf]
  %v87 = vld [vmem:[%s3 + $0xc] sm:$0xf]
  %v88 = vld [vmem:[%s4] sm:$0x1]
  %v90 = vlaneseq
  %v91 = vshrl.u32 %v90, 7
  %v92 = vsub.s32 0, %v91
  %v93 = vrot.slane %v88, %v92
  %v99 = vunpack.c.l.b16 %v84
  %v100 = vunpack.c.l.b16 %v85
  %v101 = vunpack.c.l.b16 %v86
  %v102 = vunpack.c.l.b16 %v87
  %v103 = vpack.c.b16 %v100, %v99
  %v104 = vpack.c.b16 %v102, %v101
  %vm107 = vcmask 261120
  %v109 = vsel %vm107, %v83, 0
  %111 = vmatprep.subr.bf16.mxu0 0
  %112 = vmatpush1.bf16.msra.mxu0 0
  %113 = vmatprep.subr.bf16.mxu0 0
  %114 = vmatpush1.bf16.msra.mxu0 0
  %115 = vmatprep.subr.bf16.mxu0 0
  %116 = vmatpush1.bf16.msra.mxu0 0
  %117 = vmatprep.subr.bf16.mxu0 0
  %118 = vmatpush1.bf16.msra.mxu0 0
  %119 = vmatprep.subr.bf16.mxu0 0
  %120 = vmatpush1.bf16.msra.mxu0 0
  %121 = vmatprep.subr.bf16.mxu0 0
  %122 = vmatpush1.bf16.msra.mxu0 0
  %123 = vmatprep.subr.bf16.mxu0 0
  %124 = vmatpush1.bf16.msra.mxu0 %v104
  %125 = vmatprep.subr.bf16.mxu0 0
  %126 = vmatpush1.bf16.msra.mxu0 %v103
  %127 = vmatprep.subr.bf16.mxu0 0
  %128 = vmatpush2.bf16.msra.mxu0 0
  %129 = vmatprep.subr.bf16.mxu0 0
  %130 = vmatpush2.bf16.msra.mxu0 0
  %131 = vmatprep.subr.bf16.mxu0 0
  %132 = vmatpush2.bf16.msra.mxu0 0
  %133 = vmatprep.subr.bf16.mxu0 0
  %134 = vmatpush2.bf16.msra.mxu0 0
  %135 = vmatprep.subr.bf16.mxu0 0
  %136 = vmatpush2.bf16.msra.mxu0 0
  %137 = vmatprep.subr.bf16.mxu0 0
  %138 = vmatpush2.bf16.msra.mxu0 0
  %139 = vmatprep.subr.bf16.mxu0 0
  %140 = vmatpush2.bf16.msra.mxu0 0
  %141 = vmatprep.subr.bf16.mxu0 0
  %142 = vmatpush2.bf16.msra.mxu0 0
  %143 = vmatprep.mubr.bf16.mxu0 0
  %144 = vmatmul.mubr.bf16.gmra.mxu0 %v109
  %v145 = vpop.f32.mrf.mxu0
  %v146 = vadd.f32 %v93, %v145
  %v147 = vpop.f32.mrf.mxu0
  %v148 = vpop.f32.mrf.mxu0
  %v149 = vpop.f32.mrf.mxu0
  %150 = vdwg.mxu0
  %vm151 = vcmask 31744
  %152 = vst.msk [vmem:[%s5] sm:$0xff] %vm151, %v146
  // Predicated region
  $region22: #{tpu_custom_call.1} parent=0 // pred_check
    _
  $region23: #{tpu_custom_call.1} parent=0 // pred_check_branch
    %154 = sbr.rel (0) target = $region25
  $region24: #{tpu_custom_call.1} parent=0 // pred_region
    _
  $region25: #{tpu_custom_call.1} parent=0 // pred_fallthru
    _
  // Predicated region
  $region26: #{tpu_custom_call.1} parent=0 // pred_check
    _
  $region27: #{tpu_custom_call.1} parent=0 // pred_check_branch
    %156 = sbr.rel (0) target = $region29
  $region28: #{tpu_custom_call.1} parent=0 // pred_region
    _
  $region29: #{tpu_custom_call.1} parent=0 // pred_fallthru
    _

</llo_original>
